<compile_context>
chip_gen: v5e
topology: v5e:2x2
jax: 0.10.0
libtpu: 0.0.40
codegen_flags: <defaults>
</compile_context>

<pallas_src>
import jax
import jax.numpy as jnp
import numpy as np
from jax.experimental import pallas as pl
from jax.experimental.pallas import tpu as pltpu


# ----------------------------- fused kernel ---------------------------------
def fused_encoder_kernel(tok_ref,   # VMEM (T*B, 1)   int32  time-major tokens
                         emb_ref,   # VMEM (VOCAB, E) f32
                         wih_ref,   # VMEM (E, 3H)    f32    lane-packed [r|z|n]
                         whh_ref,   # VMEM (H, 3H)    f32    lane-packed [r|z|n]
                         b_ref,     # VMEM (2, 3H)    f32    rows: [b_ih, b_hh]
                         ctx_ref,   # VMEM (B*N, F)   f32    flattened facts
                         wkv_ref,   # VMEM (F, 2H)    f32    lane-packed [key|val]
                         out_ref):  # VMEM (B, H)     f32
    TB = tok_ref.shape[0]
    VOCAB, E = emb_ref.shape
    H3 = wih_ref.shape[1]
    H = H3 // 3
    BN, F = ctx_ref.shape
    B = out_ref.shape[0]
    T = TB // B
    N = BN // B

    # ---- embedding gather, once, via exact one-hot MXU matmul --------------
    tok = tok_ref[...]                                           # (TB, 1) int32
    vid = jax.lax.broadcasted_iota(jnp.int32, (TB, VOCAB), 1)
    onehot = (vid == tok).astype(jnp.float32)                    # (TB, VOCAB)
    x_all = jnp.dot(onehot, emb_ref[...],
                    preferred_element_type=jnp.float32)          # (TB, E)

    # ---- hoisted input projection: all gates, all timesteps, one matmul ----
    b_ih = b_ref[0:1, :]                                         # (1, 3H)
    b_hh = b_ref[1:2, :]                                         # (1, 3H)
    gi = jnp.dot(x_all, wih_ref[...],
                 preferred_element_type=jnp.float32) + b_ih      # (TB, 3H)

    # ---- GRU recurrence: one MXU matmul per step on the critical path ------
    whh = whh_ref[...]                                           # (H, 3H)
    h = jnp.zeros((B, H), jnp.float32)
    for t in range(T):
        gi_t = gi[t * B:(t + 1) * B, :]                          # static (B, 3H)
        gh = jnp.dot(h, whh, preferred_element_type=jnp.float32) + b_hh
        r = jax.nn.sigmoid(gi_t[:, 0 * H:1 * H] + gh[:, 0 * H:1 * H])
        z = jax.nn.sigmoid(gi_t[:, 1 * H:2 * H] + gh[:, 1 * H:2 * H])
        n = jnp.tanh(gi_t[:, 2 * H:3 * H] + r * gh[:, 2 * H:3 * H])
        h = (1.0 - z) * n + z * h
    s = h                                                        # (B, H)

    # ---- fact encoder (fused key|value projection) + attention + add -------
    kv = jnp.dot(ctx_ref[...], wkv_ref[...],
                 preferred_element_type=jnp.float32)             # (B*N, 2H)
    kv3 = kv.reshape(B, N, 2 * H)
    key = kv3[:, :, :H]                                          # (B, N, H)
    val = kv3[:, :, H:]                                          # (B, N, H)

    # key_product = bmm(key, s.unsqueeze(2)).squeeze(2) -> (B, N)
    scores = jnp.sum(key * s[:, None, :], axis=-1)

    # softmax over facts axis
    m = jnp.max(scores, axis=-1, keepdims=True)
    e = jnp.exp(scores - m)
    denom = jnp.sum(e, axis=-1, keepdims=True)
    probs = e * pl.reciprocal(denom, approx=False)

    # memory_information = bmm(probs.unsqueeze(1), value).squeeze(1) -> (B, H)
    mem = jnp.sum(probs[:, :, None] * val, axis=1)

    out_ref[...] = (s + mem).astype(out_ref.dtype)


def run_fused_encoder(sent_tm, emb, wih_p, whh_p, b2, ctx2, wkv, B, H):
    TB = sent_tm.shape[0]
    VOCAB, E = emb.shape
    BN, F = ctx2.shape

    return pl.pallas_call(
        fused_encoder_kernel,
        out_shape=jax.ShapeDtypeStruct((B, H), jnp.float32),
        grid=(1,),
        in_specs=[
            pl.BlockSpec((TB, 1), lambda i: (0, 0)),
            pl.BlockSpec((VOCAB, E), lambda i: (0, 0)),
            pl.BlockSpec((E, 3 * H), lambda i: (0, 0)),
            pl.BlockSpec((H, 3 * H), lambda i: (0, 0)),
            pl.BlockSpec((2, 3 * H), lambda i: (0, 0)),
            pl.BlockSpec((BN, F), lambda i: (0, 0)),
            pl.BlockSpec((F, 2 * H), lambda i: (0, 0)),
        ],
        out_specs=pl.BlockSpec((B, H), lambda i: (0, 0)),
        compiler_params=pltpu.CompilerParams(dimension_semantics=("arbitrary",)),
    )(sent_tm, emb, wih_p, whh_p, b2, ctx2, wkv)


# -------------------- one-time weight packing (off hot path) -----------------
def prepare_params(params):
    """Pack / transpose weights once when parameters are loaded."""
    H = params["w_hh"].shape[1]
    packed = {
        "embedding": params["embedding"].astype(jnp.float32),
        # lane-packed gate weights: (E,3H) / (H,3H), gate order [r | z | n]
        "wih_p": params["w_ih"].astype(jnp.float32).T,
        "whh_p": params["w_hh"].astype(jnp.float32).T,
        # biases: rows [b_ih; b_hh], each (3H,)
        "b2": jnp.stack([params["b_ih"], params["b_hh"]], axis=0).astype(jnp.float32),
        # fused fact projection: (F, 2H) = [w_mem.T | w_val.T]
        "wkv": jnp.concatenate(
            [params["w_mem"].astype(jnp.float32).T,
             params["w_val"].astype(jnp.float32).T], axis=1),
        "H": H,
    }
    return packed


# ------------------------------- wrapper -------------------------------------
def input_encoder_forward(sentence, context, packed):
    B, T = sentence.shape
    _, N, F = context.shape
    H = packed["H"]

    # time-major flattened tokens: row t*B + b  ->  sentence[b, t]
    sent_tm = sentence.astype(jnp.int32).T.reshape(T * B, 1)
    ctx2 = context.astype(jnp.float32).reshape(B * N, F)

    return run_fused_encoder(
        sent_tm, packed["embedding"], packed["wih_p"], packed["whh_p"],
        packed["b2"], ctx2, packed["wkv"], B, H)                 # (B, H)


# ------------------------ pure-JAX reference (check) --------------------------
def reference_forward(sentence, context, params):
    emb = params["embedding"][sentence]
    B, T, E = emb.shape
    H = params["w_hh"].shape[1]
    h = jnp.zeros((B, H), jnp.float32)
    for t in range(T):
        x_t = emb[:, t, :]
        gi = x_t @ params["w_ih"].T + params["b_ih"]
        gh = h @ params["w_hh"].T + params["b_hh"]
        i_r, i_z, i_n = gi[:, :H], gi[:, H:2 * H], gi[:, 2 * H:]
        h_r, h_z, h_n = gh[:, :H], gh[:, H:2 * H], gh[:, 2 * H:]
        r = jax.nn.sigmoid(i_r + h_r)
        z = jax.nn.sigmoid(i_z + h_z)
        n = jnp.tanh(i_n + r * h_n)
        h = (1.0 - z) * n + z * h
    s = h                                               # output[:, -1]
    key = jnp.einsum("bnf,hf->bnh", context, params["w_mem"])
    val = jnp.einsum("bnf,hf->bnh", context, params["w_val"])
    scores = jnp.einsum("bnh,bh->bn", key, s)
    probs = jax.nn.softmax(scores, axis=1)
    mem = jnp.einsum("bn,bnh->bh", probs, val)
    return s + mem


# --------------------------------- main ---------------------------------------
if __name__ == "__main__":
    # SentenceEncoder(vocab=50, embed=32, hidden=32, num_layers=1,
    #                 bidirectional=False); FactEncoder(input_size=16, embed_size=32)
    B, T, N = 2, 8, 8
    VOCAB, E, H, F = 50, 32, 32, 16

    key = jax.random.PRNGKey(0)
    ks = jax.random.split(key, 9)
    params = {
        "embedding": jax.random.normal(ks[0], (VOCAB, E), jnp.float32) * 0.1,
        "w_ih": jax.random.normal(ks[1], (3 * H, E), jnp.float32) * 0.1,
        "w_hh": jax.random.normal(ks[2], (3 * H, H), jnp.float32) * 0.1,
        "b_ih": jax.random.normal(ks[3], (3 * H,), jnp.float32) * 0.1,
        "b_hh": jax.random.normal(ks[4], (3 * H,), jnp.float32) * 0.1,
        "w_mem": jax.random.normal(ks[5], (H, F), jnp.float32) * 0.1,   # memory Linear, no bias
        "w_val": jax.random.normal(ks[6], (H, F), jnp.float32) * 0.1,   # value  Linear, no bias
    }

    sentence = jax.random.randint(ks[7], (B, T), 0, VOCAB, dtype=jnp.int32)
    context = jax.random.normal(ks[8], (B, N, F), jnp.float32)

    packed = prepare_params(params)          # one-time packing, off the hot path

    out = input_encoder_forward(sentence, context, packed)
    out = jax.block_until_ready(out)

    ref = jax.block_until_ready(reference_forward(sentence, context, params))
    assert out.shape == (B, H)
    np.testing.assert_allclose(np.asarray(out), np.asarray(ref), atol=1e-5, rtol=1e-5)

    print("KERNEL_OK")
</pallas_src>

<mosaic_0001>
module attributes {stable_mosaic.version = 11 : i64} {
  func.func @fused_encoder_kernel(%arg0: i32, %arg1: memref<16x1xi32, #tpu.memory_space<vmem>>, %arg2: memref<50x32xf32, #tpu.memory_space<vmem>>, %arg3: memref<32x96xf32, #tpu.memory_space<vmem>>, %arg4: memref<32x96xf32, #tpu.memory_space<vmem>>, %arg5: memref<2x96xf32, #tpu.memory_space<vmem>>, %arg6: memref<16x16xf32, #tpu.memory_space<vmem>>, %arg7: memref<16x64xf32, #tpu.memory_space<vmem>>, %arg8: memref<2x32xf32, #tpu.memory_space<vmem>>) attributes {dimension_semantics = [#tpu.dimension_semantics<arbitrary>], iteration_bounds = array<i64: 1>, scalar_prefetch = 0 : i64, scratch_operands = 0 : i64, tpu.core_type = #tpu.core_type<tc>, window_params = [{pipeline_mode = #tpu.pipeline_mode<synchronous>, transform_indices = @transform_0, window_bounds = array<i64: 16, 1>}, {pipeline_mode = #tpu.pipeline_mode<synchronous>, transform_indices = @transform_1, window_bounds = array<i64: 50, 32>}, {pipeline_mode = #tpu.pipeline_mode<synchronous>, transform_indices = @transform_2, window_bounds = array<i64: 32, 96>}, {pipeline_mode = #tpu.pipeline_mode<synchronous>, transform_indices = @transform_3, window_bounds = array<i64: 32, 96>}, {pipeline_mode = #tpu.pipeline_mode<synchronous>, transform_indices = @transform_4, window_bounds = array<i64: 2, 96>}, {pipeline_mode = #tpu.pipeline_mode<synchronous>, transform_indices = @transform_5, window_bounds = array<i64: 16, 16>}, {pipeline_mode = #tpu.pipeline_mode<synchronous>, transform_indices = @transform_6, window_bounds = array<i64: 16, 64>}, {pipeline_mode = #tpu.pipeline_mode<synchronous>, transform_indices = @transform_7, window_bounds = array<i64: 2, 32>}]} {
    %c0 = arith.constant 0 : index
    %c0_0 = arith.constant 0 : index
    %0 = vector.load %arg1[%c0, %c0_0] : memref<16x1xi32, #tpu.memory_space<vmem>>, vector<16x1xi32>
    %1 = tpu.iota {dimensions = array<i32: 1>} : vector<16x50xi32>
    %2 = vector.broadcast %0 : vector<16x1xi32> to vector<16x50xi32>
    %3 = arith.cmpi eq, %1, %2 : vector<16x50xi32>
    %4 = arith.extui %3 : vector<16x50xi1> to vector<16x50xi32>
    %5 = arith.sitofp %4 : vector<16x50xi32> to vector<16x50xf32>
    %c0_1 = arith.constant 0 : index
    %c0_2 = arith.constant 0 : index
    %6 = vector.load %arg2[%c0_1, %c0_2] : memref<50x32xf32, #tpu.memory_space<vmem>>, vector<50x32xf32>
    %cst = arith.constant dense<0.000000e+00> : vector<16x32xf32>
    %7 = tpu.matmul %5, %6, %cst {dimension_numbers = #tpu.dot_dimension_numbers<[1], [0], [0], [1], [0, 0, 1, 1], [], []>} : vector<16x50xf32>, vector<50x32xf32>, vector<16x32xf32> -> vector<16x32xf32>
    %c0_3 = arith.constant 0 : index
    %c0_4 = arith.constant 0 : index
    %8 = vector.load %arg5[%c0_3, %c0_4] : memref<2x96xf32, #tpu.memory_space<vmem>>, vector<1x96xf32>
    %c1 = arith.constant 1 : index
    %c0_5 = arith.constant 0 : index
    %9 = vector.load %arg5[%c1, %c0_5] : memref<2x96xf32, #tpu.memory_space<vmem>>, vector<1x96xf32>
    %c0_6 = arith.constant 0 : index
    %c0_7 = arith.constant 0 : index
    %10 = vector.load %arg3[%c0_6, %c0_7] : memref<32x96xf32, #tpu.memory_space<vmem>>, vector<32x96xf32>
    %cst_8 = arith.constant dense<0.000000e+00> : vector<16x96xf32>
    %11 = tpu.matmul %7, %10, %cst_8 {dimension_numbers = #tpu.dot_dimension_numbers<[1], [0], [0], [1], [0, 0, 1, 1], [], []>} : vector<16x32xf32>, vector<32x96xf32>, vector<16x96xf32> -> vector<16x96xf32>
    %12 = vector.broadcast %8 : vector<1x96xf32> to vector<16x96xf32>
    %13 = arith.addf %11, %12 : vector<16x96xf32>
    %c0_9 = arith.constant 0 : index
    %c0_10 = arith.constant 0 : index
    %14 = vector.load %arg4[%c0_9, %c0_10] : memref<32x96xf32, #tpu.memory_space<vmem>>, vector<32x96xf32>
    %cst_11 = arith.constant 0.000000e+00 : f32
    %15 = vector.broadcast %cst_11 : f32 to vector<2x32xf32>
    %16 = vector.extract_strided_slice %13 {offsets = [0, 0], sizes = [2, 96], strides = [1, 1]} : vector<16x96xf32> to vector<2x96xf32>
    %cst_12 = arith.constant dense<0.000000e+00> : vector<2x96xf32>
    %17 = tpu.matmul %15, %14, %cst_12 {dimension_numbers = #tpu.dot_dimension_numbers<[1], [0], [0], [1], [0, 0, 1, 1], [], []>} : vector<2x32xf32>, vector<32x96xf32>, vector<2x96xf32> -> vector<2x96xf32>
    %18 = vector.broadcast %9 : vector<1x96xf32> to vector<2x96xf32>
    %19 = arith.addf %17, %18 : vector<2x96xf32>
    %20 = vector.extract_strided_slice %16 {offsets = [0, 0], sizes = [2, 32], strides = [1, 1]} : vector<2x96xf32> to vector<2x32xf32>
    %21 = vector.extract_strided_slice %19 {offsets = [0, 0], sizes = [2, 32], strides = [1, 1]} : vector<2x96xf32> to vector<2x32xf32>
    %22 = arith.addf %20, %21 : vector<2x32xf32>
    %23 = arith.negf %22 : vector<2x32xf32>
    %24 = math.exp %23 : vector<2x32xf32>
    %cst_13 = arith.constant 1.000000e+00 : f32
    %25 = vector.broadcast %cst_13 : f32 to vector<2x32xf32>
    %26 = arith.addf %25, %24 : vector<2x32xf32>
    %27 = arith.divf %25, %26 : vector<2x32xf32>
    %28 = vector.extract_strided_slice %16 {offsets = [0, 32], sizes = [2, 32], strides = [1, 1]} : vector<2x96xf32> to vector<2x32xf32>
    %29 = vector.extract_strided_slice %19 {offsets = [0, 32], sizes = [2, 32], strides = [1, 1]} : vector<2x96xf32> to vector<2x32xf32>
    %30 = arith.addf %28, %29 : vector<2x32xf32>
    %31 = arith.negf %30 : vector<2x32xf32>
    %32 = math.exp %31 : vector<2x32xf32>
    %cst_14 = arith.constant 1.000000e+00 : f32
    %33 = vector.broadcast %cst_14 : f32 to vector<2x32xf32>
    %34 = arith.addf %33, %32 : vector<2x32xf32>
    %35 = arith.divf %33, %34 : vector<2x32xf32>
    %36 = vector.extract_strided_slice %16 {offsets = [0, 64], sizes = [2, 32], strides = [1, 1]} : vector<2x96xf32> to vector<2x32xf32>
    %37 = vector.extract_strided_slice %19 {offsets = [0, 64], sizes = [2, 32], strides = [1, 1]} : vector<2x96xf32> to vector<2x32xf32>
    %38 = arith.mulf %27, %37 : vector<2x32xf32>
    %39 = arith.addf %36, %38 : vector<2x32xf32>
    %40 = math.tanh %39 : vector<2x32xf32>
    %cst_15 = arith.constant 1.000000e+00 : f32
    %41 = vector.broadcast %cst_15 : f32 to vector<2x32xf32>
    %42 = arith.subf %41, %35 : vector<2x32xf32>
    %43 = arith.mulf %42, %40 : vector<2x32xf32>
    %44 = arith.mulf %35, %15 : vector<2x32xf32>
    %45 = arith.addf %43, %44 : vector<2x32xf32>
    %46 = vector.extract_strided_slice %13 {offsets = [2, 0], sizes = [2, 96], strides = [1, 1]} : vector<16x96xf32> to vector<2x96xf32>
    %cst_16 = arith.constant dense<0.000000e+00> : vector<2x96xf32>
    %47 = tpu.matmul %45, %14, %cst_16 {dimension_numbers = #tpu.dot_dimension_numbers<[1], [0], [0], [1], [0, 0, 1, 1], [], []>} : vector<2x32xf32>, vector<32x96xf32>, vector<2x96xf32> -> vector<2x96xf32>
    %48 = vector.broadcast %9 : vector<1x96xf32> to vector<2x96xf32>
    %49 = arith.addf %47, %48 : vector<2x96xf32>
    %50 = vector.extract_strided_slice %46 {offsets = [0, 0], sizes = [2, 32], strides = [1, 1]} : vector<2x96xf32> to vector<2x32xf32>
    %51 = vector.extract_strided_slice %49 {offsets = [0, 0], sizes = [2, 32], strides = [1, 1]} : vector<2x96xf32> to vector<2x32xf32>
    %52 = arith.addf %50, %51 : vector<2x32xf32>
    %53 = arith.negf %52 : vector<2x32xf32>
    %54 = math.exp %53 : vector<2x32xf32>
    %cst_17 = arith.constant 1.000000e+00 : f32
    %55 = vector.broadcast %cst_17 : f32 to vector<2x32xf32>
    %56 = arith.addf %55, %54 : vector<2x32xf32>
    %57 = arith.divf %55, %56 : vector<2x32xf32>
    %58 = vector.extract_strided_slice %46 {offsets = [0, 32], sizes = [2, 32], strides = [1, 1]} : vector<2x96xf32> to vector<2x32xf32>
    %59 = vector.extract_strided_slice %49 {offsets = [0, 32], sizes = [2, 32], strides = [1, 1]} : vector<2x96xf32> to vector<2x32xf32>
    %60 = arith.addf %58, %59 : vector<2x32xf32>
    %61 = arith.negf %60 : vector<2x32xf32>
    %62 = math.exp %61 : vector<2x32xf32>
    %cst_18 = arith.constant 1.000000e+00 : f32
    %63 = vector.broadcast %cst_18 : f32 to vector<2x32xf32>
    %64 = arith.addf %63, %62 : vector<2x32xf32>
    %65 = arith.divf %63, %64 : vector<2x32xf32>
    %66 = vector.extract_strided_slice %46 {offsets = [0, 64], sizes = [2, 32], strides = [1, 1]} : vector<2x96xf32> to vector<2x32xf32>
    %67 = vector.extract_strided_slice %49 {offsets = [0, 64], sizes = [2, 32], strides = [1, 1]} : vector<2x96xf32> to vector<2x32xf32>
    %68 = arith.mulf %57, %67 : vector<2x32xf32>
    %69 = arith.addf %66, %68 : vector<2x32xf32>
    %70 = math.tanh %69 : vector<2x32xf32>
    %cst_19 = arith.constant 1.000000e+00 : f32
    %71 = vector.broadcast %cst_19 : f32 to vector<2x32xf32>
    %72 = arith.subf %71, %65 : vector<2x32xf32>
    %73 = arith.mulf %72, %70 : vector<2x32xf32>
    %74 = arith.mulf %65, %45 : vector<2x32xf32>
    %75 = arith.addf %73, %74 : vector<2x32xf32>
    %76 = vector.extract_strided_slice %13 {offsets = [4, 0], sizes = [2, 96], strides = [1, 1]} : vector<16x96xf32> to vector<2x96xf32>
    %cst_20 = arith.constant dense<0.000000e+00> : vector<2x96xf32>
    %77 = tpu.matmul %75, %14, %cst_20 {dimension_numbers = #tpu.dot_dimension_numbers<[1], [0], [0], [1], [0, 0, 1, 1], [], []>} : vector<2x32xf32>, vector<32x96xf32>, vector<2x96xf32> -> vector<2x96xf32>
    %78 = vector.broadcast %9 : vector<1x96xf32> to vector<2x96xf32>
    %79 = arith.addf %77, %78 : vector<2x96xf32>
    %80 = vector.extract_strided_slice %76 {offsets = [0, 0], sizes = [2, 32], strides = [1, 1]} : vector<2x96xf32> to vector<2x32xf32>
    %81 = vector.extract_strided_slice %79 {offsets = [0, 0], sizes = [2, 32], strides = [1, 1]} : vector<2x96xf32> to vector<2x32xf32>
    %82 = arith.addf %80, %81 : vector<2x32xf32>
    %83 = arith.negf %82 : vector<2x32xf32>
    %84 = math.exp %83 : vector<2x32xf32>
    %cst_21 = arith.constant 1.000000e+00 : f32
    %85 = vector.broadcast %cst_21 : f32 to vector<2x32xf32>
    %86 = arith.addf %85, %84 : vector<2x32xf32>
    %87 = arith.divf %85, %86 : vector<2x32xf32>
    %88 = vector.extract_strided_slice %76 {offsets = [0, 32], sizes = [2, 32], strides = [1, 1]} : vector<2x96xf32> to vector<2x32xf32>
    %89 = vector.extract_strided_slice %79 {offsets = [0, 32], sizes = [2, 32], strides = [1, 1]} : vector<2x96xf32> to vector<2x32xf32>
    %90 = arith.addf %88, %89 : vector<2x32xf32>
    %91 = arith.negf %90 : vector<2x32xf32>
    %92 = math.exp %91 : vector<2x32xf32>
    %cst_22 = arith.constant 1.000000e+00 : f32
    %93 = vector.broadcast %cst_22 : f32 to vector<2x32xf32>
    %94 = arith.addf %93, %92 : vector<2x32xf32>
    %95 = arith.divf %93, %94 : vector<2x32xf32>
    %96 = vector.extract_strided_slice %76 {offsets = [0, 64], sizes = [2, 32], strides = [1, 1]} : vector<2x96xf32> to vector<2x32xf32>
    %97 = vector.extract_strided_slice %79 {offsets = [0, 64], sizes = [2, 32], strides = [1, 1]} : vector<2x96xf32> to vector<2x32xf32>
    %98 = arith.mulf %87, %97 : vector<2x32xf32>
    %99 = arith.addf %96, %98 : vector<2x32xf32>
    %100 = math.tanh %99 : vector<2x32xf32>
    %cst_23 = arith.constant 1.000000e+00 : f32
    %101 = vector.broadcast %cst_23 : f32 to vector<2x32xf32>
    %102 = arith.subf %101, %95 : vector<2x32xf32>
    %103 = arith.mulf %102, %100 : vector<2x32xf32>
    %104 = arith.mulf %95, %75 : vector<2x32xf32>
    %105 = arith.addf %103, %104 : vector<2x32xf32>
    %106 = vector.extract_strided_slice %13 {offsets = [6, 0], sizes = [2, 96], strides = [1, 1]} : vector<16x96xf32> to vector<2x96xf32>
    %cst_24 = arith.constant dense<0.000000e+00> : vector<2x96xf32>
    %107 = tpu.matmul %105, %14, %cst_24 {dimension_numbers = #tpu.dot_dimension_numbers<[1], [0], [0], [1], [0, 0, 1, 1], [], []>} : vector<2x32xf32>, vector<32x96xf32>, vector<2x96xf32> -> vector<2x96xf32>
    %108 = vector.broadcast %9 : vector<1x96xf32> to vector<2x96xf32>
    %109 = arith.addf %107, %108 : vector<2x96xf32>
    %110 = vector.extract_strided_slice %106 {offsets = [0, 0], sizes = [2, 32], strides = [1, 1]} : vector<2x96xf32> to vector<2x32xf32>
    %111 = vector.extract_strided_slice %109 {offsets = [0, 0], sizes = [2, 32], strides = [1, 1]} : vector<2x96xf32> to vector<2x32xf32>
    %112 = arith.addf %110, %111 : vector<2x32xf32>
    %113 = arith.negf %112 : vector<2x32xf32>
    %114 = math.exp %113 : vector<2x32xf32>
    %cst_25 = arith.constant 1.000000e+00 : f32
    %115 = vector.broadcast %cst_25 : f32 to vector<2x32xf32>
    %116 = arith.addf %115, %114 : vector<2x32xf32>
    %117 = arith.divf %115, %116 : vector<2x32xf32>
    %118 = vector.extract_strided_slice %106 {offsets = [0, 32], sizes = [2, 32], strides = [1, 1]} : vector<2x96xf32> to vector<2x32xf32>
    %119 = vector.extract_strided_slice %109 {offsets = [0, 32], sizes = [2, 32], strides = [1, 1]} : vector<2x96xf32> to vector<2x32xf32>
    %120 = arith.addf %118, %119 : vector<2x32xf32>
    %121 = arith.negf %120 : vector<2x32xf32>
    %122 = math.exp %121 : vector<2x32xf32>
    %cst_26 = arith.constant 1.000000e+00 : f32
    %123 = vector.broadcast %cst_26 : f32 to vector<2x32xf32>
    %124 = arith.addf %123, %122 : vector<2x32xf32>
    %125 = arith.divf %123, %124 : vector<2x32xf32>
    %126 = vector.extract_strided_slice %106 {offsets = [0, 64], sizes = [2, 32], strides = [1, 1]} : vector<2x96xf32> to vector<2x32xf32>
    %127 = vector.extract_strided_slice %109 {offsets = [0, 64], sizes = [2, 32], strides = [1, 1]} : vector<2x96xf32> to vector<2x32xf32>
    %128 = arith.mulf %117, %127 : vector<2x32xf32>
    %129 = arith.addf %126, %128 : vector<2x32xf32>
    %130 = math.tanh %129 : vector<2x32xf32>
    %cst_27 = arith.constant 1.000000e+00 : f32
    %131 = vector.broadcast %cst_27 : f32 to vector<2x32xf32>
    %132 = arith.subf %131, %125 : vector<2x32xf32>
    %133 = arith.mulf %132, %130 : vector<2x32xf32>
    %134 = arith.mulf %125, %105 : vector<2x32xf32>
    %135 = arith.addf %133, %134 : vector<2x32xf32>
    %136 = vector.extract_strided_slice %13 {offsets = [8, 0], sizes = [2, 96], strides = [1, 1]} : vector<16x96xf32> to vector<2x96xf32>
    %cst_28 = arith.constant dense<0.000000e+00> : vector<2x96xf32>
    %137 = tpu.matmul %135, %14, %cst_28 {dimension_numbers = #tpu.dot_dimension_numbers<[1], [0], [0], [1], [0, 0, 1, 1], [], []>} : vector<2x32xf32>, vector<32x96xf32>, vector<2x96xf32> -> vector<2x96xf32>
    %138 = vector.broadcast %9 : vector<1x96xf32> to vector<2x96xf32>
    %139 = arith.addf %137, %138 : vector<2x96xf32>
    %140 = vector.extract_strided_slice %136 {offsets = [0, 0], sizes = [2, 32], strides = [1, 1]} : vector<2x96xf32> to vector<2x32xf32>
    %141 = vector.extract_strided_slice %139 {offsets = [0, 0], sizes = [2, 32], strides = [1, 1]} : vector<2x96xf32> to vector<2x32xf32>
    %142 = arith.addf %140, %141 : vector<2x32xf32>
    %143 = arith.negf %142 : vector<2x32xf32>
    %144 = math.exp %143 : vector<2x32xf32>
    %cst_29 = arith.constant 1.000000e+00 : f32
    %145 = vector.broadcast %cst_29 : f32 to vector<2x32xf32>
    %146 = arith.addf %145, %144 : vector<2x32xf32>
    %147 = arith.divf %145, %146 : vector<2x32xf32>
    %148 = vector.extract_strided_slice %136 {offsets = [0, 32], sizes = [2, 32], strides = [1, 1]} : vector<2x96xf32> to vector<2x32xf32>
    %149 = vector.extract_strided_slice %139 {offsets = [0, 32], sizes = [2, 32], strides = [1, 1]} : vector<2x96xf32> to vector<2x32xf32>
    %150 = arith.addf %148, %149 : vector<2x32xf32>
    %151 = arith.negf %150 : vector<2x32xf32>
    %152 = math.exp %151 : vector<2x32xf32>
    %cst_30 = arith.constant 1.000000e+00 : f32
    %153 = vector.broadcast %cst_30 : f32 to vector<2x32xf32>
    %154 = arith.addf %153, %152 : vector<2x32xf32>
    %155 = arith.divf %153, %154 : vector<2x32xf32>
    %156 = vector.extract_strided_slice %136 {offsets = [0, 64], sizes = [2, 32], strides = [1, 1]} : vector<2x96xf32> to vector<2x32xf32>
    %157 = vector.extract_strided_slice %139 {offsets = [0, 64], sizes = [2, 32], strides = [1, 1]} : vector<2x96xf32> to vector<2x32xf32>
    %158 = arith.mulf %147, %157 : vector<2x32xf32>
    %159 = arith.addf %156, %158 : vector<2x32xf32>
    %160 = math.tanh %159 : vector<2x32xf32>
    %cst_31 = arith.constant 1.000000e+00 : f32
    %161 = vector.broadcast %cst_31 : f32 to vector<2x32xf32>
    %162 = arith.subf %161, %155 : vector<2x32xf32>
    %163 = arith.mulf %162, %160 : vector<2x32xf32>
    %164 = arith.mulf %155, %135 : vector<2x32xf32>
    %165 = arith.addf %163, %164 : vector<2x32xf32>
    %166 = vector.extract_strided_slice %13 {offsets = [10, 0], sizes = [2, 96], strides = [1, 1]} : vector<16x96xf32> to vector<2x96xf32>
    %cst_32 = arith.constant dense<0.000000e+00> : vector<2x96xf32>
    %167 = tpu.matmul %165, %14, %cst_32 {dimension_numbers = #tpu.dot_dimension_numbers<[1], [0], [0], [1], [0, 0, 1, 1], [], []>} : vector<2x32xf32>, vector<32x96xf32>, vector<2x96xf32> -> vector<2x96xf32>
    %168 = vector.broadcast %9 : vector<1x96xf32> to vector<2x96xf32>
    %169 = arith.addf %167, %168 : vector<2x96xf32>
    %170 = vector.extract_strided_slice %166 {offsets = [0, 0], sizes = [2, 32], strides = [1, 1]} : vector<2x96xf32> to vector<2x32xf32>
    %171 = vector.extract_strided_slice %169 {offsets = [0, 0], sizes = [2, 32], strides = [1, 1]} : vector<2x96xf32> to vector<2x32xf32>
    %172 = arith.addf %170, %171 : vector<2x32xf32>
    %173 = arith.negf %172 : vector<2x32xf32>
    %174 = math.exp %173 : vector<2x32xf32>
    %cst_33 = arith.constant 1.000000e+00 : f32
    %175 = vector.broadcast %cst_33 : f32 to vector<2x32xf32>
    %176 = arith.addf %175, %174 : vector<2x32xf32>
    %177 = arith.divf %175, %176 : vector<2x32xf32>
    %178 = vector.extract_strided_slice %166 {offsets = [0, 32], sizes = [2, 32], strides = [1, 1]} : vector<2x96xf32> to vector<2x32xf32>
    %179 = vector.extract_strided_slice %169 {offsets = [0, 32], sizes = [2, 32], strides = [1, 1]} : vector<2x96xf32> to vector<2x32xf32>
    %180 = arith.addf %178, %179 : vector<2x32xf32>
    %181 = arith.negf %180 : vector<2x32xf32>
    %182 = math.exp %181 : vector<2x32xf32>
    %cst_34 = arith.constant 1.000000e+00 : f32
    %183 = vector.broadcast %cst_34 : f32 to vector<2x32xf32>
    %184 = arith.addf %183, %182 : vector<2x32xf32>
    %185 = arith.divf %183, %184 : vector<2x32xf32>
    %186 = vector.extract_strided_slice %166 {offsets = [0, 64], sizes = [2, 32], strides = [1, 1]} : vector<2x96xf32> to vector<2x32xf32>
    %187 = vector.extract_strided_slice %169 {offsets = [0, 64], sizes = [2, 32], strides = [1, 1]} : vector<2x96xf32> to vector<2x32xf32>
    %188 = arith.mulf %177, %187 : vector<2x32xf32>
    %189 = arith.addf %186, %188 : vector<2x32xf32>
    %190 = math.tanh %189 : vector<2x32xf32>
    %cst_35 = arith.constant 1.000000e+00 : f32
    %191 = vector.broadcast %cst_35 : f32 to vector<2x32xf32>
    %192 = arith.subf %191, %185 : vector<2x32xf32>
    %193 = arith.mulf %192, %190 : vector<2x32xf32>
    %194 = arith.mulf %185, %165 : vector<2x32xf32>
    %195 = arith.addf %193, %194 : vector<2x32xf32>
    %196 = vector.extract_strided_slice %13 {offsets = [12, 0], sizes = [2, 96], strides = [1, 1]} : vector<16x96xf32> to vector<2x96xf32>
    %cst_36 = arith.constant dense<0.000000e+00> : vector<2x96xf32>
    %197 = tpu.matmul %195, %14, %cst_36 {dimension_numbers = #tpu.dot_dimension_numbers<[1], [0], [0], [1], [0, 0, 1, 1], [], []>} : vector<2x32xf32>, vector<32x96xf32>, vector<2x96xf32> -> vector<2x96xf32>
    %198 = vector.broadcast %9 : vector<1x96xf32> to vector<2x96xf32>
    %199 = arith.addf %197, %198 : vector<2x96xf32>
    %200 = vector.extract_strided_slice %196 {offsets = [0, 0], sizes = [2, 32], strides = [1, 1]} : vector<2x96xf32> to vector<2x32xf32>
    %201 = vector.extract_strided_slice %199 {offsets = [0, 0], sizes = [2, 32], strides = [1, 1]} : vector<2x96xf32> to vector<2x32xf32>
    %202 = arith.addf %200, %201 : vector<2x32xf32>
    %203 = arith.negf %202 : vector<2x32xf32>
    %204 = math.exp %203 : vector<2x32xf32>
    %cst_37 = arith.constant 1.000000e+00 : f32
    %205 = vector.broadcast %cst_37 : f32 to vector<2x32xf32>
    %206 = arith.addf %205, %204 : vector<2x32xf32>
    %207 = arith.divf %205, %206 : vector<2x32xf32>
    %208 = vector.extract_strided_slice %196 {offsets = [0, 32], sizes = [2, 32], strides = [1, 1]} : vector<2x96xf32> to vector<2x32xf32>
    %209 = vector.extract_strided_slice %199 {offsets = [0, 32], sizes = [2, 32], strides = [1, 1]} : vector<2x96xf32> to vector<2x32xf32>
    %210 = arith.addf %208, %209 : vector<2x32xf32>
    %211 = arith.negf %210 : vector<2x32xf32>
    %212 = math.exp %211 : vector<2x32xf32>
    %cst_38 = arith.constant 1.000000e+00 : f32
    %213 = vector.broadcast %cst_38 : f32 to vector<2x32xf32>
    %214 = arith.addf %213, %212 : vector<2x32xf32>
    %215 = arith.divf %213, %214 : vector<2x32xf32>
    %216 = vector.extract_strided_slice %196 {offsets = [0, 64], sizes = [2, 32], strides = [1, 1]} : vector<2x96xf32> to vector<2x32xf32>
    %217 = vector.extract_strided_slice %199 {offsets = [0, 64], sizes = [2, 32], strides = [1, 1]} : vector<2x96xf32> to vector<2x32xf32>
    %218 = arith.mulf %207, %217 : vector<2x32xf32>
    %219 = arith.addf %216, %218 : vector<2x32xf32>
    %220 = math.tanh %219 : vector<2x32xf32>
    %cst_39 = arith.constant 1.000000e+00 : f32
    %221 = vector.broadcast %cst_39 : f32 to vector<2x32xf32>
    %222 = arith.subf %221, %215 : vector<2x32xf32>
    %223 = arith.mulf %222, %220 : vector<2x32xf32>
    %224 = arith.mulf %215, %195 : vector<2x32xf32>
    %225 = arith.addf %223, %224 : vector<2x32xf32>
    %226 = vector.extract_strided_slice %13 {offsets = [14, 0], sizes = [2, 96], strides = [1, 1]} : vector<16x96xf32> to vector<2x96xf32>
    %cst_40 = arith.constant dense<0.000000e+00> : vector<2x96xf32>
    %227 = tpu.matmul %225, %14, %cst_40 {dimension_numbers = #tpu.dot_dimension_numbers<[1], [0], [0], [1], [0, 0, 1, 1], [], []>} : vector<2x32xf32>, vector<32x96xf32>, vector<2x96xf32> -> vector<2x96xf32>
    %228 = vector.broadcast %9 : vector<1x96xf32> to vector<2x96xf32>
    %229 = arith.addf %227, %228 : vector<2x96xf32>
    %230 = vector.extract_strided_slice %226 {offsets = [0, 0], sizes = [2, 32], strides = [1, 1]} : vector<2x96xf32> to vector<2x32xf32>
    %231 = vector.extract_strided_slice %229 {offsets = [0, 0], sizes = [2, 32], strides = [1, 1]} : vector<2x96xf32> to vector<2x32xf32>
    %232 = arith.addf %230, %231 : vector<2x32xf32>
    %233 = arith.negf %232 : vector<2x32xf32>
    %234 = math.exp %233 : vector<2x32xf32>
    %cst_41 = arith.constant 1.000000e+00 : f32
    %235 = vector.broadcast %cst_41 : f32 to vector<2x32xf32>
    %236 = arith.addf %235, %234 : vector<2x32xf32>
    %237 = arith.divf %235, %236 : vector<2x32xf32>
    %238 = vector.extract_strided_slice %226 {offsets = [0, 32], sizes = [2, 32], strides = [1, 1]} : vector<2x96xf32> to vector<2x32xf32>
    %239 = vector.extract_strided_slice %229 {offsets = [0, 32], sizes = [2, 32], strides = [1, 1]} : vector<2x96xf32> to vector<2x32xf32>
    %240 = arith.addf %238, %239 : vector<2x32xf32>
    %241 = arith.negf %240 : vector<2x32xf32>
    %242 = math.exp %241 : vector<2x32xf32>
    %cst_42 = arith.constant 1.000000e+00 : f32
    %243 = vector.broadcast %cst_42 : f32 to vector<2x32xf32>
    %244 = arith.addf %243, %242 : vector<2x32xf32>
    %245 = arith.divf %243, %244 : vector<2x32xf32>
    %246 = vector.extract_strided_slice %226 {offsets = [0, 64], sizes = [2, 32], strides = [1, 1]} : vector<2x96xf32> to vector<2x32xf32>
    %247 = vector.extract_strided_slice %229 {offsets = [0, 64], sizes = [2, 32], strides = [1, 1]} : vector<2x96xf32> to vector<2x32xf32>
    %248 = arith.mulf %237, %247 : vector<2x32xf32>
    %249 = arith.addf %246, %248 : vector<2x32xf32>
    %250 = math.tanh %249 : vector<2x32xf32>
    %cst_43 = arith.constant 1.000000e+00 : f32
    %251 = vector.broadcast %cst_43 : f32 to vector<2x32xf32>
    %252 = arith.subf %251, %245 : vector<2x32xf32>
    %253 = arith.mulf %252, %250 : vector<2x32xf32>
    %254 = arith.mulf %245, %225 : vector<2x32xf32>
    %255 = arith.addf %253, %254 : vector<2x32xf32>
    %c0_44 = arith.constant 0 : index
    %c0_45 = arith.constant 0 : index
    %256 = vector.load %arg6[%c0_44, %c0_45] : memref<16x16xf32, #tpu.memory_space<vmem>>, vector<16x16xf32>
    %c0_46 = arith.constant 0 : index
    %c0_47 = arith.constant 0 : index
    %257 = vector.load %arg7[%c0_46, %c0_47] : memref<16x64xf32, #tpu.memory_space<vmem>>, vector<16x64xf32>
    %cst_48 = arith.constant dense<0.000000e+00> : vector<16x64xf32>
    %258 = tpu.matmul %256, %257, %cst_48 {dimension_numbers = #tpu.dot_dimension_numbers<[1], [0], [0], [1], [0, 0, 1, 1], [], []>} : vector<16x16xf32>, vector<16x64xf32>, vector<16x64xf32> -> vector<16x64xf32>
    %259 = vector.shape_cast %258 : vector<16x64xf32> to vector<2x8x64xf32>
    %260 = vector.extract_strided_slice %259 {offsets = [0, 0, 0], sizes = [2, 8, 32], strides = [1, 1, 1]} : vector<2x8x64xf32> to vector<2x8x32xf32>
    %261 = vector.extract_strided_slice %259 {offsets = [0, 0, 32], sizes = [2, 8, 32], strides = [1, 1, 1]} : vector<2x8x64xf32> to vector<2x8x32xf32>
    %262 = vector.shape_cast %255 : vector<2x32xf32> to vector<2x1x32xf32>
    %263 = vector.broadcast %262 : vector<2x1x32xf32> to vector<2x8x32xf32>
    %264 = arith.mulf %260, %263 : vector<2x8x32xf32>
    %cst_49 = arith.constant dense<0.000000e+00> : vector<2x8xf32>
    %265 = vector.multi_reduction <add>, %264, %cst_49 [2] : vector<2x8x32xf32> to vector<2x8xf32>
    %cst_50 = arith.constant dense<0xFF800000> : vector<2xf32>
    %266 = vector.multi_reduction <maximumf>, %265, %cst_50 [1] : vector<2x8xf32> to vector<2xf32>
    %267 = vector.shape_cast %266 : vector<2xf32> to vector<2x1xf32>
    %268 = vector.broadcast %267 : vector<2x1xf32> to vector<2x8xf32>
    %269 = arith.subf %265, %268 : vector<2x8xf32>
    %270 = math.exp %269 : vector<2x8xf32>
    %cst_51 = arith.constant dense<0.000000e+00> : vector<2xf32>
    %271 = vector.multi_reduction <add>, %270, %cst_51 [1] : vector<2x8xf32> to vector<2xf32>
    %272 = vector.shape_cast %271 : vector<2xf32> to vector<2x1xf32>
    %273 = tpu.reciprocal %272 : vector<2x1xf32> -> vector<2x1xf32>
    %274 = vector.broadcast %273 : vector<2x1xf32> to vector<2x8xf32>
    %275 = arith.mulf %270, %274 : vector<2x8xf32>
    %276 = vector.shape_cast %275 : vector<2x8xf32> to vector<2x8x1xf32>
    %277 = vector.broadcast %276 : vector<2x8x1xf32> to vector<2x8x32xf32>
    %278 = arith.mulf %277, %261 : vector<2x8x32xf32>
    %cst_52 = arith.constant dense<0.000000e+00> : vector<2x32xf32>
    %279 = vector.multi_reduction <add>, %278, %cst_52 [1] : vector<2x8x32xf32> to vector<2x32xf32>
    %280 = arith.addf %255, %279 : vector<2x32xf32>
    %c0_53 = arith.constant 0 : index
    %c0_54 = arith.constant 0 : index
    %281 = vector.load %arg8[%c0_53, %c0_54] : memref<2x32xf32, #tpu.memory_space<vmem>>, vector<2x32xf32>
    tpu.vector_store %arg8[%c0_53, %c0_54], %280 {strides = array<i32>} : memref<2x32xf32, #tpu.memory_space<vmem>>, vector<2x32xf32>,
    return
  }
  func.func @transform_0(%arg0: i32) -> (i32, i32) {
    %c0_i32 = arith.constant 0 : i32
    %c0_i32_0 = arith.constant 0 : i32
    %c0_i32_1 = arith.constant 0 : i32
    return %c0_i32, %c0_i32_0 : i32, i32
  }
  func.func @transform_1(%arg0: i32) -> (i32, i32) {
    %c0_i32 = arith.constant 0 : i32
    %c0_i32_0 = arith.constant 0 : i32
    %c0_i32_1 = arith.constant 0 : i32
    return %c0_i32, %c0_i32_0 : i32, i32
  }
  func.func @transform_2(%arg0: i32) -> (i32, i32) {
    %c0_i32 = arith.constant 0 : i32
    %c0_i32_0 = arith.constant 0 : i32
    %c0_i32_1 = arith.constant 0 : i32
    return %c0_i32, %c0_i32_0 : i32, i32
  }
  func.func @transform_3(%arg0: i32) -> (i32, i32) {
    %c0_i32 = arith.constant 0 : i32
    %c0_i32_0 = arith.constant 0 : i32
    %c0_i32_1 = arith.constant 0 : i32
    return %c0_i32, %c0_i32_0 : i32, i32
  }
  func.func @transform_4(%arg0: i32) -> (i32, i32) {
    %c0_i32 = arith.constant 0 : i32
    %c0_i32_0 = arith.constant 0 : i32
    %c0_i32_1 = arith.constant 0 : i32
    return %c0_i32, %c0_i32_0 : i32, i32
  }
  func.func @transform_5(%arg0: i32) -> (i32, i32) {
    %c0_i32 = arith.constant 0 : i32
    %c0_i32_0 = arith.constant 0 : i32
    %c0_i32_1 = arith.constant 0 : i32
    return %c0_i32, %c0_i32_0 : i32, i32
  }
  func.func @transform_6(%arg0: i32) -> (i32, i32) {
    %c0_i32 = arith.constant 0 : i32
    %c0_i32_0 = arith.constant 0 : i32
    %c0_i32_1 = arith.constant 0 : i32
    return %c0_i32, %c0_i32_0 : i32, i32
  }
  func.func @transform_7(%arg0: i32) -> (i32, i32) {
    %c0_i32 = arith.constant 0 : i32
    %c0_i32_0 = arith.constant 0 : i32
    %c0_i32_1 = arith.constant 0 : i32
    return %c0_i32, %c0_i32_0 : i32, i32
  }
}

</mosaic_0001>

<llo_original>
// kernel: tpu_custom_call.1
$region0: #{tpu_custom_call.1}
  #allocation0 [shape = 'u32[]', space=smem, size = 0x4, offset = 0x4, fixed_abs, tag = 'smem constant byte address 0x4 - core index']
  #allocation1 [shape = 'u32[72,128]{1,0:T(1,128)}', space=vmem, size = 0x9000, scoped, tag = 'internal scratch']
  %s0 = inlined_call_operand.vmem [shape: s32[16,1], index: 0, kind: input, shape index: {}]
  %s1 = inlined_call_operand.vmem [shape: f32[50,32], index: 1, kind: input, shape index: {}]
  %s2 = inlined_call_operand.vmem [shape: f32[32,96], index: 2, kind: input, shape index: {}]
  %s3 = inlined_call_operand.vmem [shape: f32[32,96], index: 3, kind: input, shape index: {}]
  %s4 = inlined_call_operand.vmem [shape: f32[2,96], index: 4, kind: input, shape index: {}]
  %s5 = inlined_call_operand.vmem [shape: f32[16,16], index: 5, kind: input, shape index: {}]
  %s6 = inlined_call_operand.vmem [shape: f32[16,64], index: 6, kind: input, shape index: {}]
  %s7 = inlined_call_operand.hbm [shape: f32[2,32], index: 7, kind: output, shape index: {}]
  %s8 = sld [smem:[#allocation0]]
  $region38: #{tpu_custom_call.1} parent=0
    _
  %s10 = ssub.s32 1, %s8
  %s11 = scalar_select 0, %s10, %s8
  $region1: #{tpu_custom_call.1} parent=0
    #allocation2 [shape = 'u8[1024]{0}', space=vmem, size = 0x400, scoped, tag = 'output window, operand 0, single buffered']
    #allocation3 [shape = 's32[1]{0}', space=sflag, size = 0x4, scoped, tag = 'scoped memory for tpu_custom_call.1']
    %12 = vsyncpa [#allocation3], 0
    // Predicated region
    $region2: #{tpu_custom_call.1} parent=1 // pred_check
      _
    $region3: #{tpu_custom_call.1} parent=1 // pred_check_branch
      %14 = sbr.rel (0) target = $region5
    $region4: #{tpu_custom_call.1} parent=1 // pred_region
      _
    $region5: #{tpu_custom_call.1} parent=1 // pred_fallthru
      _
    // Predicated region
    $region6: #{tpu_custom_call.1} parent=1 // pred_check
      _
    $region7: #{tpu_custom_call.1} parent=1 // pred_check_branch
      %16 = sbr.rel (0) target = $region9
    $region8: #{tpu_custom_call.1} parent=1 // pred_region
      _
    $region9: #{tpu_custom_call.1} parent=1 // pred_fallthru
      _
    // Predicated region
    $region10: #{tpu_custom_call.1} parent=1 // pred_check
      _
    $region11: #{tpu_custom_call.1} parent=1 // pred_check_branch
      %18 = sbr.rel (0) target = $region13
    $region12: #{tpu_custom_call.1} parent=1 // pred_region
      _
    $region13: #{tpu_custom_call.1} parent=1 // pred_fallthru
      _
    // Predicated region
    $region14: #{tpu_custom_call.1} parent=1 // pred_check
      _
    $region15: #{tpu_custom_call.1} parent=1 // pred_check_branch
      %20 = sbr.rel (0) target = $region17
    $region16: #{tpu_custom_call.1} parent=1 // pred_region
      _
    $region17: #{tpu_custom_call.1} parent=1 // pred_fallthru
      _
    // Predicated region
    $region18: #{tpu_custom_call.1} parent=1 // pred_check
      _
    $region19: #{tpu_custom_call.1} parent=1 // pred_check_branch
      %22 = sbr.rel (0) target = $region21
    $region20: #{tpu_custom_call.1} parent=1 // pred_region
      _
    $region21: #{tpu_custom_call.1} parent=1 // pred_fallthru
      _
    // Predicated region
    $region22: #{tpu_custom_call.1} parent=1 // pred_check
      _
    $region23: #{tpu_custom_call.1} parent=1 // pred_check_branch
      %24 = sbr.rel (0) target = $region25
    $region24: #{tpu_custom_call.1} parent=1 // pred_region
      _
    $region25: #{tpu_custom_call.1} parent=1 // pred_fallthru
      _
    // Predicated region
    $region26: #{tpu_custom_call.1} parent=1 // pred_check
      _
    $region27: #{tpu_custom_call.1} parent=1 // pred_check_branch
      %26 = sbr.rel (0) target = $region29
    $region28: #{tpu_custom_call.1} parent=1 // pred_region
      _
    $region29: #{tpu_custom_call.1} parent=1 // pred_fallthru
      _
    %v27 = vld [vmem:[%s0] sm:$0xff]
    %v28 = vld [vmem:[%s0 + $0x8] sm:$0xff]
    %v29 = vlaneseq
    %v30 = vand.u32 %v29, 127
    %31 = vset.pattern.permute.xlu0 0
    %32 = vperm.xlu0 %31, %v27
    %v33 = vpop.permute.xlu0 %32
    %34 = vset.pattern.permute.xlu0 0
    %35 = vperm.xlu0 %34, %v28
    %v36 = vpop.permute.xlu0 %35
    %vm37 = vcmp.eq.s32.totalorder %v30, %v33
    %vm38 = vcmp.eq.s32.totalorder %v30, %v36
    %v39 = vsel %vm37, 1, 0
    %v40 = vsel %vm38, 1, 0
    %v41 = vcvt.s32.f32 %v39
    %v42 = vcvt.s32.f32 %v40
    %v43 = vld [vmem:[%s1] sm:$0xff]
    %v44 = vld [vmem:[%s1 + $0x8] sm:$0xff]
    %v45 = vld [vmem:[%s1 + $0x10] sm:$0xff]
    %v46 = vld [vmem:[%s1 + $0x18] sm:$0xff]
    %v47 = vld [vmem:[%s1 + $0x20] sm:$0xff]
    %v48 = vld [vmem:[%s1 + $0x28] sm:$0xff]
    %v49 = vld [vmem:[%s1 + $0x30] sm:$0x3]
    %vm50 = vcmask 408576
    %v52 = vsel %vm50, %v41, 0
    %v55 = vsel %vm50, %v42, 0
    %vm57 = vcmask 1041408
    %v59 = vsel %vm57, %v49, 0
    %61 = vmatpush.msra.mxu0 0.0
    %62 = vmatpush.msra.mxu0 0.0
    %63 = vmatpush.msra.mxu0 0.0
    %64 = vmatpush.msra.mxu0 0.0
    %65 = vmatpush.msra.mxu0 0.0
    %66 = vmatpush.msra.mxu0 0.0
    %67 = vmatpush.msra.mxu0 0.0
    %68 = vmatpush.msra.mxu0 0.0
    %69 = vmatpush.msra.mxu0 0.0
    %70 = vmatpush.msra.mxu0 %v59
    %71 = vmatpush.msra.mxu0 %v48
    %72 = vmatpush.msra.mxu0 %v47
    %73 = vmatpush.msra.mxu0 %v46
    %74 = vmatpush.msra.mxu0 %v45
    %75 = vmatpush.msra.mxu0 %v44
    %76 = vmatpush.msra.mxu0 %v43
    %77 = vmatmul.f32.gmra.mxu0 %v52
    %v78 = vpop.f32.mrf.mxu0
    %v79 = vadd.f32 0.0, %v78
    %80 = vmatmul.f32.gmra.mxu0 %v55
    %v81 = vpop.f32.mrf.mxu0
    %v82 = vadd.f32 0.0, %v81
    %83 = vdwg.mxu0
    %v84 = vld [vmem:[%s4] sm:$0x1]
    %v85 = vld [vmem:[%s4 + $0x1] sm:$0x1]
    %v86 = vld [vmem:[%s2] sm:$0xff]
    %v87 = vld [vmem:[%s2 + $0x8] sm:$0xff]
    %v88 = vld [vmem:[%s2 + $0x10] sm:$0xff]
    %v89 = vld [vmem:[%s2 + $0x18] sm:$0xff]
    %v90 = vperm.slane %v84, 0
    %vm91 = vcmask 261120
    %v93 = vsel %vm91, %v79, 0
    %v96 = vsel %vm91, %v82, 0
    %98 = vmatpush.msra.mxu0 0.0
    %99 = vmatpush.msra.mxu0 0.0
    %100 = vmatpush.msra.mxu0 0.0
    %101 = vmatpush.msra.mxu0 0.0
    %102 = vmatpush.msra.mxu0 0.0
    %103 = vmatpush.msra.mxu0 0.0
    %104 = vmatpush.msra.mxu0 0.0
    %105 = vmatpush.msra.mxu0 0.0
    %106 = vmatpush.msra.mxu0 0.0
    %107 = vmatpush.msra.mxu0 0.0
    %108 = vmatpush.msra.mxu0 0.0
    %109 = vmatpush.msra.mxu0 0.0
    %110 = vmatpush.msra.mxu0 %v89
    %111 = vmatpush.msra.mxu0 %v88
    %112 = vmatpush.msra.mxu0 %v87
    %113 = vmatpush.msra.mxu0 %v86
    %114 = vmatmul.f32.gmra.mxu0 %v93
    %v115 = vpop.f32.mrf.mxu0
    %v116 = vadd.f32 %v90, %v115
    %117 = vmatmul.f32.gmra.mxu0 %v96
    %v118 = vpop.f32.mrf.mxu0
    %v119 = vadd.f32 %v90, %v118
    %120 = vdwg.mxu0
    %v121 = vld [vmem:[%s3] sm:$0xff]
    %v122 = vld [vmem:[%s3 + $0x8] sm:$0xff]
    %v123 = vld [vmem:[%s3 + $0x10] sm:$0xff]
    %v124 = vld [vmem:[%s3 + $0x18] sm:$0xff]
    %v125 = vperm.slane %v85, 0
    %v127 = vsel %vm91, 0.0, 0
    %129 = vmatpush.msra.mxu0 0.0
    %130 = vmatpush.msra.mxu0 0.0
    %131 = vmatpush.msra.mxu0 0.0
    %132 = vmatpush.msra.mxu0 0.0
    %133 = vmatpush.msra.mxu0 0.0
    %134 = vmatpush.msra.mxu0 0.0
    %135 = vmatpush.msra.mxu0 0.0
    %136 = vmatpush.msra.mxu0 0.0
    %137 = vmatpush.msra.mxu0 0.0
    %138 = vmatpush.msra.mxu0 0.0
    %139 = vmatpush.msra.mxu0 0.0
    %140 = vmatpush.msra.mxu0 0.0
    %141 = vmatpush.msra.mxu0 %v124
    %142 = vmatpush.msra.mxu0 %v123
    %143 = vmatpush.msra.mxu0 %v122
    %144 = vmatpush.msra.mxu0 %v121
    %145 = vmatmul.f32.gmra.mxu0 %v127
    %v146 = vpop.f32.mrf.mxu0
    %v147 = vadd.f32 %v125, %v146
    %148 = vdwg.mxu0
    %v149 = vadd.f32 %v116, %v147
    %v150 = vxor.u32 %v149, 2147483648
    %v151 = vmul.f32 %v150, 1.442695
    %v152 = vpow.pop %v151
    %v153 = vadd.f32 %v152, 1.0
    %v154 = vrcp.pop %v153
    %v155 = vmul.f32 %v153, %v154
    %v156 = vsub.f32 1.0, %v155
    %v157 = vmul.f32 %v154, %v156
    %v158 = vadd.f32 %v154, %v157
    %vm159 = vweird.f32 %v153
    %vm160 = vweird.f32 %v154
    %vm161 = vmor %vm159, %vm160
    %v162 = vsel %vm161, %v154, %v158
    %v163 = vand.u32 2147483647, %v153
    %vm164 = vcmp.eq.f32.partialorder %v163, 8.507059e+37
    %v165 = vand.u32 %v153, 2147483648
    %v166 = vor.u32 1.1754944e-38, %v165
    %v167 = vsel %vm164, %v166, %v162
    %v168 = vmul.f32 1.0, %v167
    %170 = vrot.lane.b32.xlu0 %v147, 64
    %v171 = vpop.permute.xlu0 %170
    %v173 = vmul.f32 %v168, %v171
    %175 = vrot.lane.b32.xlu0 %v173, 64
    %v176 = vpop.permute.xlu0 %175
    %v178 = vadd.f32 %v116, %v176
    %v179 = vtanh.pop %v178
    %v180 = vsub.f32 1.0, %v168
    %182 = vrot.lane.b32.xlu0 %v179, 96
    %v183 = vpop.permute.xlu0 %182
    %v185 = vmul.f32 %v180, %v183
    %v186 = vmul.f32 %v168, 0.0
    %v187 = vadd.f32 %v185, %v186
    %189 = vrot.lane.b32.xlu0 %v187, 96
    %v190 = vpop.permute.xlu0 %189
    %v191 = vsel %vm91, %v190, 0
    %193 = vmatpush.msra.mxu0 0.0
    %194 = vmatpush.msra.mxu0 0.0
    %195 = vmatpush.msra.mxu0 0.0
    %196 = vmatpush.msra.mxu0 0.0
    %197 = vmatpush.msra.mxu0 0.0
    %198 = vmatpush.msra.mxu0 0.0
    %199 = vmatpush.msra.mxu0 0.0
    %200 = vmatpush.msra.mxu0 0.0
    %201 = vmatpush.msra.mxu0 0.0
    %202 = vmatpush.msra.mxu0 0.0
    %203 = vmatpush.msra.mxu0 0.0
    %204 = vmatpush.msra.mxu0 0.0
    %205 = vmatpush.msra.mxu0 %v124
    %206 = vmatpush.msra.mxu0 %v123
    %207 = vmatpush.msra.mxu0 %v122
    %208 = vmatpush.msra.mxu0 %v121
    %209 = vmatmul.f32.gmra.mxu0 %v191
    %v210 = vpop.f32.mrf.mxu0
    %v211 = vadd.f32 %v125, %v210
    %212 = vdwg.mxu0
    %v214 = vrot.slane %v211, 6
    %v216 = vadd.f32 %v116, %v214
    %v217 = vxor.u32 %v216, 2147483648
    %v218 = vmul.f32 %v217, 1.442695
    %v219 = vpow.pop %v218
    %v220 = vadd.f32 %v219, 1.0
    %v221 = vrcp.pop %v220
    %v222 = vmul.f32 %v220, %v221
    %v223 = vsub.f32 1.0, %v222
    %v224 = vmul.f32 %v221, %v223
    %v225 = vadd.f32 %v221, %v224
    %vm226 = vweird.f32 %v220
    %vm227 = vweird.f32 %v221
    %vm228 = vmor %vm226, %vm227
    %v229 = vsel %vm228, %v221, %v225
    %v230 = vand.u32 2147483647, %v220
    %vm231 = vcmp.eq.f32.partialorder %v230, 8.507059e+37
    %v232 = vand.u32 %v220, 2147483648
    %v233 = vor.u32 1.1754944e-38, %v232
    %v234 = vsel %vm231, %v233, %v229
    %v235 = vmul.f32 1.0, %v234
    %236 = vrot.lane.b32.xlu0 %v214, 64
    %v237 = vpop.permute.xlu0 %236
    %v239 = vmul.f32 %v235, %v237
    %241 = vrot.lane.b32.xlu0 %v239, 64
    %v242 = vpop.permute.xlu0 %241
    %v244 = vadd.f32 %v116, %v242
    %v245 = vtanh.pop %v244
    %v246 = vsub.f32 1.0, %v235
    %248 = vrot.lane.b32.xlu0 %v245, 96
    %v249 = vpop.permute.xlu0 %248
    %v251 = vmul.f32 %v246, %v249
    %v252 = vrot.slane %v187, 6
    %v254 = vmul.f32 %v235, %v252
    %v255 = vadd.f32 %v251, %v254
    %v257 = vrot.slane %v255, 2
    %258 = vrot.lane.b32.xlu0 %v257, 96
    %v259 = vpop.permute.xlu0 %258
    %v260 = vsel %vm91, %v259, 0
    %262 = vmatpush.msra.mxu0 0.0
    %263 = vmatpush.msra.mxu0 0.0
    %264 = vmatpush.msra.mxu0 0.0
    %265 = vmatpush.msra.mxu0 0.0
    %266 = vmatpush.msra.mxu0 0.0
    %267 = vmatpush.msra.mxu0 0.0
    %268 = vmatpush.msra.mxu0 0.0
    %269 = vmatpush.msra.mxu0 0.0
    %270 = vmatpush.msra.mxu0 0.0
    %271 = vmatpush.msra.mxu0 0.0
    %272 = vmatpush.msra.mxu0 0.0
    %273 = vmatpush.msra.mxu0 0.0
    %274 = vmatpush.msra.mxu0 %v124
    %275 = vmatpush.msra.mxu0 %v123
    %276 = vmatpush.msra.mxu0 %v122
    %277 = vmatpush.msra.mxu0 %v121
    %278 = vmatmul.f32.gmra.mxu0 %v260
    %v279 = vpop.f32.mrf.mxu0
    %v280 = vadd.f32 %v125, %v279
    %281 = vdwg.mxu0
    %v283 = vrot.slane %v280, 4
    %v285 = vadd.f32 %v116, %v283
    %v286 = vxor.u32 %v285, 2147483648
    %v287 = vmul.f32 %v286, 1.442695
    %v288 = vpow.pop %v287
    %v289 = vadd.f32 %v288, 1.0
    %v290 = vrcp.pop %v289
    %v291 = vmul.f32 %v289, %v290
    %v292 = vsub.f32 1.0, %v291
    %v293 = vmul.f32 %v290, %v292
    %v294 = vadd.f32 %v290, %v293
    %vm295 = vweird.f32 %v289
    %vm296 = vweird.f32 %v290
    %vm297 = vmor %vm295, %vm296
    %v298 = vsel %vm297, %v290, %v294
    %v299 = vand.u32 2147483647, %v289
    %vm300 = vcmp.eq.f32.partialorder %v299, 8.507059e+37
    %v301 = vand.u32 %v289, 2147483648
    %v302 = vor.u32 1.1754944e-38, %v301
    %v303 = vsel %vm300, %v302, %v298
    %v304 = vmul.f32 1.0, %v303
    %305 = vrot.lane.b32.xlu0 %v283, 64
    %v306 = vpop.permute.xlu0 %305
    %v308 = vmul.f32 %v304, %v306
    %310 = vrot.lane.b32.xlu0 %v308, 64
    %v311 = vpop.permute.xlu0 %310
    %v313 = vadd.f32 %v116, %v311
    %v314 = vtanh.pop %v313
    %v315 = vsub.f32 1.0, %v304
    %317 = vrot.lane.b32.xlu0 %v314, 96
    %v318 = vpop.permute.xlu0 %317
    %v320 = vmul.f32 %v315, %v318
    %v321 = vrot.slane %v255, 6
    %v323 = vmul.f32 %v304, %v321
    %v324 = vadd.f32 %v320, %v323
    %v326 = vrot.slane %v324, 4
    %327 = vrot.lane.b32.xlu0 %v326, 96
    %v328 = vpop.permute.xlu0 %327
    %v329 = vsel %vm91, %v328, 0
    %331 = vmatpush.msra.mxu0 0.0
    %332 = vmatpush.msra.mxu0 0.0
    %333 = vmatpush.msra.mxu0 0.0
    %334 = vmatpush.msra.mxu0 0.0
    %335 = vmatpush.msra.mxu0 0.0
    %336 = vmatpush.msra.mxu0 0.0
    %337 = vmatpush.msra.mxu0 0.0
    %338 = vmatpush.msra.mxu0 0.0
    %339 = vmatpush.msra.mxu0 0.0
    %340 = vmatpush.msra.mxu0 0.0
    %341 = vmatpush.msra.mxu0 0.0
    %342 = vmatpush.msra.mxu0 0.0
    %343 = vmatpush.msra.mxu0 %v124
    %344 = vmatpush.msra.mxu0 %v123
    %345 = vmatpush.msra.mxu0 %v122
    %346 = vmatpush.msra.mxu0 %v121
    %347 = vmatmul.f32.gmra.mxu0 %v329
    %v348 = vpop.f32.mrf.mxu0
    %v349 = vadd.f32 %v125, %v348
    %350 = vdwg.mxu0
    %v352 = vrot.slane %v349, 2
    %v354 = vadd.f32 %v116, %v352
    %v355 = vxor.u32 %v354, 2147483648
    %v356 = vmul.f32 %v355, 1.442695
    %v357 = vpow.pop %v356
    %v358 = vadd.f32 %v357, 1.0
    %v359 = vrcp.pop %v358
    %v360 = vmul.f32 %v358, %v359
    %v361 = vsub.f32 1.0, %v360
    %v362 = vmul.f32 %v359, %v361
    %v363 = vadd.f32 %v359, %v362
    %vm364 = vweird.f32 %v358
    %vm365 = vweird.f32 %v359
    %vm366 = vmor %vm364, %vm365
    %v367 = vsel %vm366, %v359, %v363
    %v368 = vand.u32 2147483647, %v358
    %vm369 = vcmp.eq.f32.partialorder %v368, 8.507059e+37
    %v370 = vand.u32 %v358, 2147483648
    %v371 = vor.u32 1.1754944e-38, %v370
    %v372 = vsel %vm369, %v371, %v367
    %v373 = vmul.f32 1.0, %v372
    %374 = vrot.lane.b32.xlu0 %v352, 64
    %v375 = vpop.permute.xlu0 %374
    %v377 = vmul.f32 %v373, %v375
    %379 = vrot.lane.b32.xlu0 %v377, 64
    %v380 = vpop.permute.xlu0 %379
    %v382 = vadd.f32 %v116, %v380
    %v383 = vtanh.pop %v382
    %v384 = vsub.f32 1.0, %v373
    %386 = vrot.lane.b32.xlu0 %v383, 96
    %v387 = vpop.permute.xlu0 %386
    %v389 = vmul.f32 %v384, %v387
    %v390 = vrot.slane %v324, 6
    %v392 = vmul.f32 %v373, %v390
    %v393 = vadd.f32 %v389, %v392
    %v395 = vrot.slane %v393, 6
    %396 = vrot.lane.b32.xlu0 %v395, 96
    %v397 = vpop.permute.xlu0 %396
    %v398 = vsel %vm91, %v397, 0
    %400 = vmatpush.msra.mxu0 0.0
    %401 = vmatpush.msra.mxu0 0.0
    %402 = vmatpush.msra.mxu0 0.0
    %403 = vmatpush.msra.mxu0 0.0
    %404 = vmatpush.msra.mxu0 0.0
    %405 = vmatpush.msra.mxu0 0.0
    %406 = vmatpush.msra.mxu0 0.0
    %407 = vmatpush.msra.mxu0 0.0
    %408 = vmatpush.msra.mxu0 0.0
    %409 = vmatpush.msra.mxu0 0.0
    %410 = vmatpush.msra.mxu0 0.0
    %411 = vmatpush.msra.mxu0 0.0
    %412 = vmatpush.msra.mxu0 %v124
    %413 = vmatpush.msra.mxu0 %v123
    %414 = vmatpush.msra.mxu0 %v122
    %415 = vmatpush.msra.mxu0 %v121
    %416 = vmatmul.f32.gmra.mxu0 %v398
    %v417 = vpop.f32.mrf.mxu0
    %v418 = vadd.f32 %v125, %v417
    %419 = vdwg.mxu0
    %v420 = vadd.f32 %v119, %v418
    %v421 = vxor.u32 %v420, 2147483648
    %v422 = vmul.f32 %v421, 1.442695
    %v423 = vpow.pop %v422
    %v424 = vadd.f32 %v423, 1.0
    %v425 = vrcp.pop %v424
    %v426 = vmul.f32 %v424, %v425
    %v427 = vsub.f32 1.0, %v426
    %v428 = vmul.f32 %v425, %v427
    %v429 = vadd.f32 %v425, %v428
    %vm430 = vweird.f32 %v424
    %vm431 = vweird.f32 %v425
    %vm432 = vmor %vm430, %vm431
    %v433 = vsel %vm432, %v425, %v429
    %v434 = vand.u32 2147483647, %v424
    %vm435 = vcmp.eq.f32.partialorder %v434, 8.507059e+37
    %v436 = vand.u32 %v424, 2147483648
    %v437 = vor.u32 1.1754944e-38, %v436
    %v438 = vsel %vm435, %v437, %v433
    %v439 = vmul.f32 1.0, %v438
    %441 = vrot.lane.b32.xlu0 %v418, 64
    %v442 = vpop.permute.xlu0 %441
    %v444 = vmul.f32 %v439, %v442
    %446 = vrot.lane.b32.xlu0 %v444, 64
    %v447 = vpop.permute.xlu0 %446
    %v449 = vadd.f32 %v119, %v447
    %v450 = vtanh.pop %v449
    %v451 = vsub.f32 1.0, %v439
    %453 = vrot.lane.b32.xlu0 %v450, 96
    %v454 = vpop.permute.xlu0 %453
    %v456 = vmul.f32 %v451, %v454
    %v458 = vmul.f32 %v439, %v395
    %v459 = vadd.f32 %v456, %v458
    %461 = vrot.lane.b32.xlu0 %v459, 96
    %v462 = vpop.permute.xlu0 %461
    %v463 = vsel %vm91, %v462, 0
    %465 = vmatpush.msra.mxu0 0.0
    %466 = vmatpush.msra.mxu0 0.0
    %467 = vmatpush.msra.mxu0 0.0
    %468 = vmatpush.msra.mxu0 0.0
    %469 = vmatpush.msra.mxu0 0.0
    %470 = vmatpush.msra.mxu0 0.0
    %471 = vmatpush.msra.mxu0 0.0
    %472 = vmatpush.msra.mxu0 0.0
    %473 = vmatpush.msra.mxu0 0.0
    %474 = vmatpush.msra.mxu0 0.0
    %475 = vmatpush.msra.mxu0 0.0
    %476 = vmatpush.msra.mxu0 0.0
    %477 = vmatpush.msra.mxu0 %v124
    %478 = vmatpush.msra.mxu0 %v123
    %479 = vmatpush.msra.mxu0 %v122
    %480 = vmatpush.msra.mxu0 %v121
    %481 = vmatmul.f32.gmra.mxu0 %v463
    %v482 = vpop.f32.mrf.mxu0
    %v483 = vadd.f32 %v125, %v482
    %484 = vdwg.mxu0
    %v486 = vrot.slane %v483, 6
    %v488 = vadd.f32 %v119, %v486
    %v489 = vxor.u32 %v488, 2147483648
    %v490 = vmul.f32 %v489, 1.442695
    %v491 = vpow.pop %v490
    %v492 = vadd.f32 %v491, 1.0
    %v493 = vrcp.pop %v492
    %v494 = vmul.f32 %v492, %v493
    %v495 = vsub.f32 1.0, %v494
    %v496 = vmul.f32 %v493, %v495
    %v497 = vadd.f32 %v493, %v496
    %vm498 = vweird.f32 %v492
    %vm499 = vweird.f32 %v493
    %vm500 = vmor %vm498, %vm499
    %v501 = vsel %vm500, %v493, %v497
    %v502 = vand.u32 2147483647, %v492
    %vm503 = vcmp.eq.f32.partialorder %v502, 8.507059e+37
    %v504 = vand.u32 %v492, 2147483648
    %v505 = vor.u32 1.1754944e-38, %v504
    %v506 = vsel %vm503, %v505, %v501
    %v507 = vmul.f32 1.0, %v506
    %508 = vrot.lane.b32.xlu0 %v486, 64
    %v509 = vpop.permute.xlu0 %508
    %v511 = vmul.f32 %v507, %v509
    %513 = vrot.lane.b32.xlu0 %v511, 64
    %v514 = vpop.permute.xlu0 %513
    %v516 = vadd.f32 %v119, %v514
    %v517 = vtanh.pop %v516
    %v518 = vsub.f32 1.0, %v507
    %520 = vrot.lane.b32.xlu0 %v517, 96
    %v521 = vpop.permute.xlu0 %520
    %v523 = vmul.f32 %v518, %v521
    %v524 = vrot.slane %v459, 6
    %v526 = vmul.f32 %v507, %v524
    %v527 = vadd.f32 %v523, %v526
    %v529 = vrot.slane %v527, 2
    %530 = vrot.lane.b32.xlu0 %v529, 96
    %v531 = vpop.permute.xlu0 %530
    %v532 = vsel %vm91, %v531, 0
    %534 = vmatpush.msra.mxu0 0.0
    %535 = vmatpush.msra.mxu0 0.0
    %536 = vmatpush.msra.mxu0 0.0
    %537 = vmatpush.msra.mxu0 0.0
    %538 = vmatpush.msra.mxu0 0.0
    %539 = vmatpush.msra.mxu0 0.0
    %540 = vmatpush.msra.mxu0 0.0
    %541 = vmatpush.msra.mxu0 0.0
    %542 = vmatpush.msra.mxu0 0.0
    %543 = vmatpush.msra.mxu0 0.0
    %544 = vmatpush.msra.mxu0 0.0
    %545 = vmatpush.msra.mxu0 0.0
    %546 = vmatpush.msra.mxu0 %v124
    %547 = vmatpush.msra.mxu0 %v123
    %548 = vmatpush.msra.mxu0 %v122
    %549 = vmatpush.msra.mxu0 %v121
    %550 = vmatmul.f32.gmra.mxu0 %v532
    %v551 = vpop.f32.mrf.mxu0
    %v552 = vadd.f32 %v125, %v551
    %553 = vdwg.mxu0
    %v555 = vrot.slane %v552, 4
    %v557 = vadd.f32 %v119, %v555
    %v558 = vxor.u32 %v557, 2147483648
    %v559 = vmul.f32 %v558, 1.442695
    %v560 = vpow.pop %v559
    %v561 = vadd.f32 %v560, 1.0
    %v562 = vrcp.pop %v561
    %v563 = vmul.f32 %v561, %v562
    %v564 = vsub.f32 1.0, %v563
    %v565 = vmul.f32 %v562, %v564
    %v566 = vadd.f32 %v562, %v565
    %vm567 = vweird.f32 %v561
    %vm568 = vweird.f32 %v562
    %vm569 = vmor %vm567, %vm568
    %v570 = vsel %vm569, %v562, %v566
    %v571 = vand.u32 2147483647, %v561
    %vm572 = vcmp.eq.f32.partialorder %v571, 8.507059e+37
    %v573 = vand.u32 %v561, 2147483648
    %v574 = vor.u32 1.1754944e-38, %v573
    %v575 = vsel %vm572, %v574, %v570
    %v576 = vmul.f32 1.0, %v575
    %577 = vrot.lane.b32.xlu0 %v555, 64
    %v578 = vpop.permute.xlu0 %577
    %v580 = vmul.f32 %v576, %v578
    %582 = vrot.lane.b32.xlu0 %v580, 64
    %v583 = vpop.permute.xlu0 %582
    %v585 = vadd.f32 %v119, %v583
    %v586 = vtanh.pop %v585
    %v587 = vsub.f32 1.0, %v576
    %589 = vrot.lane.b32.xlu0 %v586, 96
    %v590 = vpop.permute.xlu0 %589
    %v592 = vmul.f32 %v587, %v590
    %v593 = vrot.slane %v527, 6
    %v595 = vmul.f32 %v576, %v593
    %v596 = vadd.f32 %v592, %v595
    %v598 = vrot.slane %v596, 4
    %599 = vrot.lane.b32.xlu0 %v598, 96
    %v600 = vpop.permute.xlu0 %599
    %v601 = vsel %vm91, %v600, 0
    %603 = vmatpush.msra.mxu0 0.0
    %604 = vmatpush.msra.mxu0 0.0
    %605 = vmatpush.msra.mxu0 0.0
    %606 = vmatpush.msra.mxu0 0.0
    %607 = vmatpush.msra.mxu0 0.0
    %608 = vmatpush.msra.mxu0 0.0
    %609 = vmatpush.msra.mxu0 0.0
    %610 = vmatpush.msra.mxu0 0.0
    %611 = vmatpush.msra.mxu0 0.0
    %612 = vmatpush.msra.mxu0 0.0
    %613 = vmatpush.msra.mxu0 0.0
    %614 = vmatpush.msra.mxu0 0.0
    %615 = vmatpush.msra.mxu0 %v124
    %616 = vmatpush.msra.mxu0 %v123
    %617 = vmatpush.msra.mxu0 %v122
    %618 = vmatpush.msra.mxu0 %v121
    %619 = vmatmul.f32.gmra.mxu0 %v601
    %v620 = vpop.f32.mrf.mxu0
    %v621 = vadd.f32 %v125, %v620
    %622 = vdwg.mxu0
    %v624 = vrot.slane %v621, 2
    %v626 = vadd.f32 %v119, %v624
    %v627 = vxor.u32 %v626, 2147483648
    %v628 = vmul.f32 %v627, 1.442695
    %v629 = vpow.pop %v628
    %v630 = vadd.f32 %v629, 1.0
    %v631 = vrcp.pop %v630
    %v632 = vmul.f32 %v630, %v631
    %v633 = vsub.f32 1.0, %v632
    %v634 = vmul.f32 %v631, %v633
    %v635 = vadd.f32 %v631, %v634
    %vm636 = vweird.f32 %v630
    %vm637 = vweird.f32 %v631
    %vm638 = vmor %vm636, %vm637
    %v639 = vsel %vm638, %v631, %v635
    %v640 = vand.u32 2147483647, %v630
    %vm641 = vcmp.eq.f32.partialorder %v640, 8.507059e+37
    %v642 = vand.u32 %v630, 2147483648
    %v643 = vor.u32 1.1754944e-38, %v642
    %v644 = vsel %vm641, %v643, %v639
    %v645 = vmul.f32 1.0, %v644
    %646 = vrot.lane.b32.xlu0 %v624, 64
    %v647 = vpop.permute.xlu0 %646
    %v649 = vmul.f32 %v645, %v647
    %651 = vrot.lane.b32.xlu0 %v649, 64
    %v652 = vpop.permute.xlu0 %651
    %v654 = vadd.f32 %v119, %v652
    %v655 = vtanh.pop %v654
    %v656 = vsub.f32 1.0, %v645
    %658 = vrot.lane.b32.xlu0 %v655, 96
    %v659 = vpop.permute.xlu0 %658
    %v661 = vmul.f32 %v656, %v659
    %v662 = vrot.slane %v596, 6
    %v664 = vmul.f32 %v645, %v662
    %v665 = vadd.f32 %v661, %v664
    %v666 = vld [vmem:[%s5] sm:$0xff]
    %v667 = vld [vmem:[%s5 + $0x8] sm:$0xff]
    %v668 = vld [vmem:[%s6] sm:$0xff]
    %v669 = vld [vmem:[%s6 + $0x8] sm:$0xff]
    %vm670 = vcmask 130048
    %v672 = vsel %vm670, %v666, 0
    %v675 = vsel %vm670, %v667, 0
    %677 = vmatpush.msra.mxu0 0.0
    %678 = vmatpush.msra.mxu0 0.0
    %679 = vmatpush.msra.mxu0 0.0
    %680 = vmatpush.msra.mxu0 0.0
    %681 = vmatpush.msra.mxu0 0.0
    %682 = vmatpush.msra.mxu0 0.0
    %683 = vmatpush.msra.mxu0 0.0
    %684 = vmatpush.msra.mxu0 0.0
    %685 = vmatpush.msra.mxu0 0.0
    %686 = vmatpush.msra.mxu0 0.0
    %687 = vmatpush.msra.mxu0 0.0
    %688 = vmatpush.msra.mxu0 0.0
    %689 = vmatpush.msra.mxu0 0.0
    %690 = vmatpush.msra.mxu0 0.0
    %691 = vmatpush.msra.mxu0 %v669
    %692 = vmatpush.msra.mxu0 %v668
    %693 = vmatmul.f32.gmra.mxu0 %v672
    %v694 = vpop.f32.mrf.mxu0
    %v695 = vadd.f32 0.0, %v694
    %696 = vmatmul.f32.gmra.mxu0 %v675
    %v697 = vpop.f32.mrf.mxu0
    %v698 = vadd.f32 0.0, %v697
    %699 = vdwg.mxu0
    %701 = vst [vmem:[#allocation1] sm:$0xff] %v665
    %s702 = scalar_lea.vmem [#allocation1], 6
    %v703 = vld [vmem:[%s702] ss:$9 sm:$0xff]
    %s704 = scalar_lea.vmem [#allocation1], 7
    %v705 = vld [vmem:[%s704] ss:$9 sm:$0xff]
    %v706 = vperm.slane %v703, 0
    %v707 = vperm.slane %v705, 0
    %708 = vrot.lane.b32.xlu0 %v706, 96
    %v709 = vpop.permute.xlu0 %708
    %710 = vrot.lane.b32.xlu0 %v707, 96
    %v711 = vpop.permute.xlu0 %710
    %v714 = vmul.f32 %v695, %v709
    %v715 = vmul.f32 %v698, %v711
    %v716 = vsel %vm91, %v714, 0.0
    %717 = vadd.xlane.f32.xlu0 %v716
    %v718 = vpop.xlane.xlu0 %717
    %v719 = vsel %vm91, %v715, 0.0
    %720 = vadd.xlane.f32.xlu0 %v719
    %v721 = vpop.xlane.xlu0 %720
    %v724 = vperm.slane %v718, %v30
    %v725 = vperm.slane %v721, %v30
    %vm726 = vcmask 1041409
    %v727 = vsel %vm726, %v725, %v724
    %vm729 = vcmask 58368
    %v730 = vsel %vm729, %v727, -inf
    %731 = vmax.xlane.f32.xlu0 %v730
    %v732 = vpop.xlane.xlu0 %731
    %v734 = vperm.slane %v732, 0
    %v735 = vperm.slane %v732, 1
    %v738 = vsub.f32 %v718, %v734
    %v739 = vsub.f32 %v721, %v735
    %v740 = vmul.f32 %v738, 1.442695
    %v741 = vpow.pop %v740
    %v742 = vmul.f32 %v739, 1.442695
    %v743 = vpow.pop %v742
    %746 = vset.pattern.permute.xlu0 0
    %747 = vperm.xlu0 %746, %v741
    %v748 = vpop.permute.xlu0 %747
    %749 = vset.pattern.permute.xlu0 0
    %750 = vperm.xlu0 %749, %v743
    %v751 = vpop.permute.xlu0 %750
    %v752 = vperm.slane %v748, %v30
    %v753 = vperm.slane %v751, %v30
    %v754 = vsel %vm726, %v753, %v752
    %v756 = vsel %vm729, %v754, 0.0
    %757 = vadd.xlane.f32.xlu0 %v756
    %v758 = vpop.xlane.xlu0 %757
    %v759 = vrcp.pop %v758
    %v760 = vmul.f32 %v758, %v759
    %v761 = vsub.f32 1.0, %v760
    %v762 = vmul.f32 %v759, %v761
    %v763 = vadd.f32 %v759, %v762
    %vm764 = vweird.f32 %v758
    %vm765 = vweird.f32 %v759
    %vm766 = vmor %vm764, %vm765
    %v767 = vsel %vm766, %v759, %v763
    %v768 = vand.u32 2147483647, %v758
    %vm769 = vcmp.eq.f32.partialorder %v768, 8.507059e+37
    %v770 = vand.u32 %v758, 2147483648
    %v771 = vor.u32 1.1754944e-38, %v770
    %v772 = vsel %vm769, %v771, %v767
    %v774 = vperm.slane %v772, 0
    %v775 = vperm.slane %v772, 1
    %v778 = vmul.f32 %v741, %v774
    %v779 = vmul.f32 %v743, %v775
    %781 = vset.pattern.permute.xlu0 0
    %782 = vperm.xlu0 %781, %v778
    %v783 = vpop.permute.xlu0 %782
    %786 = vset.pattern.permute.xlu0 0
    %787 = vperm.xlu0 %786, %v779
    %v788 = vpop.permute.xlu0 %787
    %v790 = vmul.f32 %v783, %v695
    %v791 = vmul.f32 %v788, %v698
    %vm792 = vcmask 523520
    %v793 = vsel %vm792, %v790, 0.0
    %v794 = vrot.slane %v793, 4
    %v795 = vadd.f32 %v793, %v794
    %v796 = vrot.slane %v795, 2
    %v797 = vadd.f32 %v795, %v796
    %v798 = vrot.slane %v797, 1
    %v799 = vadd.f32 %v797, %v798
    %v800 = vsel %vm792, %v791, 0.0
    %v801 = vrot.slane %v800, 4
    %v802 = vadd.f32 %v800, %v801
    %v803 = vrot.slane %v802, 2
    %v804 = vadd.f32 %v802, %v803
    %v805 = vrot.slane %v804, 1
    %v806 = vadd.f32 %v804, %v805
    %vm809 = vcmask 1047559
    %v810 = vsel %vm809, %v806, %v799
    %v812 = vadd.f32 %v665, %v810
    %814 = vrot.lane.b32.xlu0 %v812, 96
    %v815 = vpop.permute.xlu0 %814
    %vm817 = vcmask 261126
    %818 = vst.msk [vmem:[#allocation2 - $0x6] sm:$0xc0] %vm817, %v815
    // Predicated region
    $region30: #{tpu_custom_call.1} parent=1 // pred_check
      _
    $region31: #{tpu_custom_call.1} parent=1 // pred_check_branch
      %820 = sbr.rel (0) target = $region33
    $region32: #{tpu_custom_call.1} parent=1 // pred_region
      %822 = vsyncadd [#allocation3], 0
      %s824 = sshll.u32 [#allocation2], 4
      %s825 = int_to_ptr.vmem [resolvable:$true] %s824
      %s826 = sshll.u32 %s7, 4
      %s827 = int_to_ptr.hbm [resolvable:$true] %s826
      %829 = dma.vmem_to_hbm [thread:$0]  %s825, 32, %s827, [#allocation3]
    $region33: #{tpu_custom_call.1} parent=1 // pred_fallthru
      _
    // Predicated region
    $region34: #{tpu_custom_call.1} parent=1 // pred_check
      _
    $region35: #{tpu_custom_call.1} parent=1 // pred_check_branch
      %831 = sbr.rel (0) target = $region37
    $region36: #{tpu_custom_call.1} parent=1 // pred_region
      %833 = dma.done [#allocation3], 32
    $region37: #{tpu_custom_call.1} parent=1 // pred_fallthru
      _
    %834 = vsyncpa [#allocation3], 1

</llo_original>
